<compile_context>
chip_gen: v7x
topology: tpu7x:2x2x1
jax: 0.10.0
libtpu: 0.0.40
codegen_flags: <defaults>
</compile_context>

<pallas_src>
import math

import jax
import jax.numpy as jnp
from jax.experimental import pallas as pl
from jax.experimental.pallas import tpu as pltpu


def _make_phase_mlp_kernel(range_type):
    """Build a fused MLP kernel for a given (static) range_type."""

    def kernel(x_ref, w1_ref, b1_ref, w2_ref, b2_ref, w3_ref, b3_ref, out_ref):
        x = x_ref[...]                                                  # (TB, D)

        # Layer 1: Linear(D, H) + ReLU   (MXU matmul, f32 accumulate)
        h = jnp.dot(x, w1_ref[...], preferred_element_type=jnp.float32) + b1_ref[...]
        h = jnp.maximum(h, 0.0)                                         # (TB, H)
        # TODO(synk): nn.Dropout is stochastic only in train mode; eval-mode forward => identity.

        # Layer 2: Linear(H, H) + ReLU
        h = jnp.dot(h, w2_ref[...], preferred_element_type=jnp.float32) + b2_ref[...]
        h = jnp.maximum(h, 0.0)                                         # (TB, H)

        # Layer 3: Linear(H, D)
        y = jnp.dot(h, w3_ref[...], preferred_element_type=jnp.float32) + b3_ref[...]  # (TB, D)

        if range_type == "tanh":
            y = jnp.tanh(y) * math.pi
        elif range_type == "linear":
            # Row-wise min/max over the feature axis (PyTorch dim=1 for 2-D input).
            y_min = jnp.min(y, axis=-1, keepdims=True)                  # (TB, 1)
            y_max = jnp.max(y, axis=-1, keepdims=True)                  # (TB, 1)
            inv = pl.reciprocal(y_max - y_min, approx=False)            # EUP, exact
            y = ((y - y_min) * inv - 0.5) * math.pi

        out_ref[...] = y.astype(out_ref.dtype)

    return kernel


def phase_mlp(x, params, range_type=None, block_b=256):
    """PhaseMLP forward.

    x:      (B, num_inputs) float32
    params: (W1 (H,D), b1 (H,), W2 (H,H), b2 (H,), W3 (D,H), b3 (D,))  -- PyTorch (out,in) layout
    """
    assert range_type in ("tanh", "linear", None)
    w1, b1, w2, b2, w3, b3 = params

    x = x.astype(jnp.float32)
    B, D = x.shape
    H = w1.shape[0]
    assert w1.shape == (H, D) and w2.shape == (H, H) and w3.shape == (D, H)

    # Pre-transpose to (in, out) so the kernel computes x @ Wt + b directly on the MXU.
    w1t = w1.T.astype(jnp.float32)              # (D, H)
    w2t = w2.T.astype(jnp.float32)              # (H, H)
    w3t = w3.T.astype(jnp.float32)              # (H, D)
    b1r = b1.reshape(1, H).astype(jnp.float32)
    b2r = b2.reshape(1, H).astype(jnp.float32)
    b3r = b3.reshape(1, D).astype(jnp.float32)

    # Batch tiling: TB must be a multiple of 8 (sublane) or equal to the full batch dim.
    block_b = max(8, (block_b // 8) * 8)
    if B <= block_b:
        tb, b_pad = B, B                       # single full-extent batch block
    else:
        tb = block_b
        b_pad = pl.cdiv(B, tb) * tb

    xp = x if b_pad == B else jnp.pad(x, ((0, b_pad - B), (0, 0)))
    grid = (b_pad // tb,)

    rep = lambda shape: pl.BlockSpec(shape, lambda i: (0, 0))   # replicated (weights/biases)

    out = pl.pallas_call(
        _make_phase_mlp_kernel(range_type),
        out_shape=jax.ShapeDtypeStruct((b_pad, D), jnp.float32),
        grid=grid,
        in_specs=[
            pl.BlockSpec((tb, D), lambda i: (i, 0)),   # x tile
            rep((D, H)),                               # W1^T
            rep((1, H)),                               # b1
            rep((H, H)),                               # W2^T
            rep((1, H)),                               # b2
            rep((H, D)),                               # W3^T
            rep((1, D)),                               # b3
        ],
        out_specs=pl.BlockSpec((tb, D), lambda i: (i, 0)),
        compiler_params=pltpu.CompilerParams(
            dimension_semantics=("parallel",),         # shard batch tiles across TCs (v7x)
            vmem_limit_bytes=64 * 1024 * 1024,         # explicit budget; fits v7x 64 MiB VMEM
        ),
    )(xp, w1t, b1r, w2t, b2r, w3t, b3r)

    return out[:B] if b_pad != B else out


def phase_mlp_ref(x, params, range_type=None):
    """Pure-JAX reference mirroring the PyTorch forward (eval mode)."""
    w1, b1, w2, b2, w3, b3 = params
    x = x.astype(jnp.float32)
    h = jnp.maximum(x @ w1.T + b1, 0.0)
    h = jnp.maximum(h @ w2.T + b2, 0.0)
    y = h @ w3.T + b3
    if range_type == "tanh":
        y = jnp.tanh(y) * math.pi
    elif range_type == "linear":
        y_min = jnp.min(y, axis=1, keepdims=True)
        y_max = jnp.max(y, axis=1, keepdims=True)
        y = ((y - y_min) / (y_max - y_min) - 0.5) * math.pi
    return y


if __name__ == "__main__":
    key = jax.random.PRNGKey(0)
    B, D, H = 16, 16, 32   # batch=16, num_inputs=16, num_hidden=32

    k_x, k_w1, k_b1, k_w2, k_b2, k_w3, k_b3 = jax.random.split(key, 7)
    x = jax.random.normal(k_x, (B, D), dtype=jnp.float32)

    def init_linear(kw, kb, fan_in, fan_out):
        bound = 1.0 / math.sqrt(fan_in)                 # PyTorch nn.Linear default init range
        w = jax.random.uniform(kw, (fan_out, fan_in), jnp.float32, -bound, bound)
        b = jax.random.uniform(kb, (fan_out,), jnp.float32, -bound, bound)
        return w, b

    w1, b1 = init_linear(k_w1, k_b1, D, H)
    w2, b2 = init_linear(k_w2, k_b2, H, H)
    w3, b3 = init_linear(k_w3, k_b3, H, D)
    params = (w1, b1, w2, b2, w3, b3)

    # block_b=8 so the small demo actually exercises a multi-step batch grid (grid=(2,)).
    for rt in (None, "tanh", "linear"):
        out = phase_mlp(x, params, range_type=rt, block_b=8)
        jax.block_until_ready(out)
        ref = phase_mlp_ref(x, params, range_type=rt)
        assert out.shape == ref.shape, f"shape mismatch for range_type={rt}"
        # Tolerance allows for MXU default-precision differences between the Pallas dot
        # lowering and the XLA reference matmuls.
        assert jnp.allclose(out, ref, atol=5e-3, rtol=5e-3), f"mismatch for range_type={rt}"

    print("KERNEL_OK")
</pallas_src>

<mosaic_0001>
module attributes {stable_mosaic.version = 11 : i64} {
  func.func @kernel(%arg0: i32, %arg1: memref<8x16xf32, #tpu.memory_space<vmem>>, %arg2: memref<16x32xf32, #tpu.memory_space<vmem>>, %arg3: memref<1x32xf32, #tpu.memory_space<vmem>>, %arg4: memref<32x32xf32, #tpu.memory_space<vmem>>, %arg5: memref<1x32xf32, #tpu.memory_space<vmem>>, %arg6: memref<32x16xf32, #tpu.memory_space<vmem>>, %arg7: memref<1x16xf32, #tpu.memory_space<vmem>>, %arg8: memref<8x16xf32, #tpu.memory_space<vmem>>) attributes {dimension_semantics = [#tpu.dimension_semantics<parallel>], iteration_bounds = array<i64: 2>, scalar_prefetch = 0 : i64, scratch_operands = 0 : i64, tpu.core_type = #tpu.core_type<tc>, window_params = [{transform_indices = @transform_0, window_bounds = array<i64: 8, 16>}, {pipeline_mode = #tpu.pipeline_mode<synchronous>, transform_indices = @transform_1, window_bounds = array<i64: 16, 32>}, {pipeline_mode = #tpu.pipeline_mode<synchronous>, transform_indices = @transform_2, window_bounds = array<i64: 1, 32>}, {pipeline_mode = #tpu.pipeline_mode<synchronous>, transform_indices = @transform_3, window_bounds = array<i64: 32, 32>}, {pipeline_mode = #tpu.pipeline_mode<synchronous>, transform_indices = @transform_4, window_bounds = array<i64: 1, 32>}, {pipeline_mode = #tpu.pipeline_mode<synchronous>, transform_indices = @transform_5, window_bounds = array<i64: 32, 16>}, {pipeline_mode = #tpu.pipeline_mode<synchronous>, transform_indices = @transform_6, window_bounds = array<i64: 1, 16>}, {transform_indices = @transform_7, window_bounds = array<i64: 8, 16>}]} {
    %c0 = arith.constant 0 : index
    %c0_0 = arith.constant 0 : index
    %0 = vector.load %arg1[%c0, %c0_0] : memref<8x16xf32, #tpu.memory_space<vmem>>, vector<8x16xf32>
    %c0_1 = arith.constant 0 : index
    %c0_2 = arith.constant 0 : index
    %1 = vector.load %arg2[%c0_1, %c0_2] : memref<16x32xf32, #tpu.memory_space<vmem>>, vector<16x32xf32>
    %cst = arith.constant dense<0.000000e+00> : vector<8x32xf32>
    %2 = tpu.matmul %0, %1, %cst {dimension_numbers = #tpu.dot_dimension_numbers<[1], [0], [0], [1], [0, 0, 1, 1], [], []>} : vector<8x16xf32>, vector<16x32xf32>, vector<8x32xf32> -> vector<8x32xf32>
    %c0_3 = arith.constant 0 : index
    %c0_4 = arith.constant 0 : index
    %3 = vector.load %arg3[%c0_3, %c0_4] : memref<1x32xf32, #tpu.memory_space<vmem>>, vector<1x32xf32>
    %4 = vector.broadcast %3 : vector<1x32xf32> to vector<8x32xf32>
    %5 = arith.addf %2, %4 : vector<8x32xf32>
    %cst_5 = arith.constant 0.000000e+00 : f32
    %6 = vector.broadcast %cst_5 : f32 to vector<8x32xf32>
    %7 = arith.maximumf %5, %6 : vector<8x32xf32>
    %c0_6 = arith.constant 0 : index
    %c0_7 = arith.constant 0 : index
    %8 = vector.load %arg4[%c0_6, %c0_7] : memref<32x32xf32, #tpu.memory_space<vmem>>, vector<32x32xf32>
    %cst_8 = arith.constant dense<0.000000e+00> : vector<8x32xf32>
    %9 = tpu.matmul %7, %8, %cst_8 {dimension_numbers = #tpu.dot_dimension_numbers<[1], [0], [0], [1], [0, 0, 1, 1], [], []>} : vector<8x32xf32>, vector<32x32xf32>, vector<8x32xf32> -> vector<8x32xf32>
    %c0_9 = arith.constant 0 : index
    %c0_10 = arith.constant 0 : index
    %10 = vector.load %arg5[%c0_9, %c0_10] : memref<1x32xf32, #tpu.memory_space<vmem>>, vector<1x32xf32>
    %11 = vector.broadcast %10 : vector<1x32xf32> to vector<8x32xf32>
    %12 = arith.addf %9, %11 : vector<8x32xf32>
    %cst_11 = arith.constant 0.000000e+00 : f32
    %13 = vector.broadcast %cst_11 : f32 to vector<8x32xf32>
    %14 = arith.maximumf %12, %13 : vector<8x32xf32>
    %c0_12 = arith.constant 0 : index
    %c0_13 = arith.constant 0 : index
    %15 = vector.load %arg6[%c0_12, %c0_13] : memref<32x16xf32, #tpu.memory_space<vmem>>, vector<32x16xf32>
    %cst_14 = arith.constant dense<0.000000e+00> : vector<8x16xf32>
    %16 = tpu.matmul %14, %15, %cst_14 {dimension_numbers = #tpu.dot_dimension_numbers<[1], [0], [0], [1], [0, 0, 1, 1], [], []>} : vector<8x32xf32>, vector<32x16xf32>, vector<8x16xf32> -> vector<8x16xf32>
    %c0_15 = arith.constant 0 : index
    %c0_16 = arith.constant 0 : index
    %17 = vector.load %arg7[%c0_15, %c0_16] : memref<1x16xf32, #tpu.memory_space<vmem>>, vector<1x16xf32>
    %18 = vector.broadcast %17 : vector<1x16xf32> to vector<8x16xf32>
    %19 = arith.addf %16, %18 : vector<8x16xf32>
    %c0_17 = arith.constant 0 : index
    %c0_18 = arith.constant 0 : index
    %20 = vector.load %arg8[%c0_17, %c0_18] : memref<8x16xf32, #tpu.memory_space<vmem>>, vector<8x16xf32>
    tpu.vector_store %arg8[%c0_17, %c0_18], %19 {strides = array<i32>} : memref<8x16xf32, #tpu.memory_space<vmem>>, vector<8x16xf32>,
    return
  }
  func.func @transform_0(%arg0: i32) -> (i32, i32) {
    %c0_i32 = arith.constant 0 : i32
    %c0_i32_0 = arith.constant 0 : i32
    return %arg0, %c0_i32 : i32, i32
  }
  func.func @transform_1(%arg0: i32) -> (i32, i32) {
    %c0_i32 = arith.constant 0 : i32
    %c0_i32_0 = arith.constant 0 : i32
    %c0_i32_1 = arith.constant 0 : i32
    return %c0_i32, %c0_i32_0 : i32, i32
  }
  func.func @transform_2(%arg0: i32) -> (i32, i32) {
    %c0_i32 = arith.constant 0 : i32
    %c0_i32_0 = arith.constant 0 : i32
    %c0_i32_1 = arith.constant 0 : i32
    return %c0_i32, %c0_i32_0 : i32, i32
  }
  func.func @transform_3(%arg0: i32) -> (i32, i32) {
    %c0_i32 = arith.constant 0 : i32
    %c0_i32_0 = arith.constant 0 : i32
    %c0_i32_1 = arith.constant 0 : i32
    return %c0_i32, %c0_i32_0 : i32, i32
  }
  func.func @transform_4(%arg0: i32) -> (i32, i32) {
    %c0_i32 = arith.constant 0 : i32
    %c0_i32_0 = arith.constant 0 : i32
    %c0_i32_1 = arith.constant 0 : i32
    return %c0_i32, %c0_i32_0 : i32, i32
  }
  func.func @transform_5(%arg0: i32) -> (i32, i32) {
    %c0_i32 = arith.constant 0 : i32
    %c0_i32_0 = arith.constant 0 : i32
    %c0_i32_1 = arith.constant 0 : i32
    return %c0_i32, %c0_i32_0 : i32, i32
  }
  func.func @transform_6(%arg0: i32) -> (i32, i32) {
    %c0_i32 = arith.constant 0 : i32
    %c0_i32_0 = arith.constant 0 : i32
    %c0_i32_1 = arith.constant 0 : i32
    return %c0_i32, %c0_i32_0 : i32, i32
  }
  func.func @transform_7(%arg0: i32) -> (i32, i32) {
    %c0_i32 = arith.constant 0 : i32
    %c0_i32_0 = arith.constant 0 : i32
    return %arg0, %c0_i32 : i32, i32
  }
}

</mosaic_0001>

<llo_original>
// kernel: tpu_custom_call.1
$region0: #{tpu_custom_call.1}
  #allocation0 [shape = 'u32[]', space=smem, size = 0x4, offset = 0x4, fixed_abs, tag = 'smem constant byte address 0x4 - core index']
  #allocation1 [shape = 'u32[144,128]{1,0:T(1,128)}', space=vmem, size = 0x12000, scoped, tag = 'internal scratch']
  %s0 = inlined_call_operand.hbm [shape: f32[16,16], index: 0, kind: input, shape index: {}]
  %s1 = inlined_call_operand.hbm [shape: f32[16,32], index: 1, kind: input, shape index: {}]
  %s2 = inlined_call_operand.hbm [shape: f32[1,32], index: 2, kind: input, shape index: {}]
  %s3 = inlined_call_operand.hbm [shape: f32[32,32], index: 3, kind: input, shape index: {}]
  %s4 = inlined_call_operand.hbm [shape: f32[1,32], index: 4, kind: input, shape index: {}]
  %s5 = inlined_call_operand.hbm [shape: f32[32,16], index: 5, kind: input, shape index: {}]
  %s6 = inlined_call_operand.hbm [shape: f32[1,16], index: 6, kind: input, shape index: {}]
  %s7 = inlined_call_operand.hbm [shape: f32[16,16], index: 7, kind: output, shape index: {}]
  %s8 = sld [smem:[#allocation0]]
  $region89: #{tpu_custom_call.1} parent=0
    _
  %s10 = ssub.s32 1, %s8
  %s11 = scalar_select 0, %s10, %s8
  $region1: #{tpu_custom_call.1} parent=0
    #allocation2 [shape = 'u8[8192]{0}', space=vmem, size = 0x2000, scoped, tag = 'input window, operand 0']
    #allocation3 [shape = 's32[2]{0}', space=sflag, size = 0x8, scoped, tag = 'scoped memory for tpu_custom_call.1']
    #allocation4 [shape = 's32[2]{0}', space=sflag, size = 0x8, scoped, tag = 'scoped memory for tpu_custom_call.1']
    #allocation5 [shape = 'u8[8192]{0}', space=vmem, size = 0x2000, scoped, tag = 'input window, operand 1, single buffered']
    #allocation6 [shape = 's32[1]{0}', space=sflag, size = 0x4, scoped, tag = 'scoped memory for tpu_custom_call.1']
    #allocation7 [shape = 'u8[512]{0}', space=vmem, size = 0x400, scoped, tag = 'input window, operand 2, single buffered']
    #allocation8 [shape = 'u8[16384]{0}', space=vmem, size = 0x4000, scoped, tag = 'input window, operand 3, single buffered']
    #allocation9 [shape = 's32[1]{0}', space=sflag, size = 0x4, scoped, tag = 'scoped memory for tpu_custom_call.1']
    #allocation10 [shape = 'u8[512]{0}', space=vmem, size = 0x400, scoped, tag = 'input window, operand 4, single buffered']
    #allocation11 [shape = 'u8[16384]{0}', space=vmem, size = 0x4000, scoped, tag = 'input window, operand 5, single buffered']
    #allocation12 [shape = 's32[1]{0}', space=sflag, size = 0x4, scoped, tag = 'scoped memory for tpu_custom_call.1']
    #allocation13 [shape = 'u8[512]{0}', space=vmem, size = 0x400, scoped, tag = 'input window, operand 6, single buffered']
    #allocation14 [shape = 'u8[8192]{0}', space=vmem, size = 0x2000, scoped, tag = 'output window, operand 0']
    %12 = vsyncpa [#allocation3], 0
    %s13 = scalar_lea.sflag [#allocation3], 1
    %14 = vsyncpa %s13, 0
    %15 = vsyncpa [#allocation6], 0
    %16 = vsyncpa [#allocation9], 0
    %17 = vsyncpa [#allocation12], 0
    %18 = vsyncpa [#allocation4], 0
    %s19 = scalar_lea.sflag [#allocation4], 1
    %20 = vsyncpa %s19, 0
    loop: start=0, step=1, limit=4
    $region2: #{tpu_custom_call.1} parent=1 // loop_pre_header
      _
    $region3: #{tpu_custom_call.1} parent=1 // loop_header
      %s22 = sphi 0, %s26
      %p23 = scmp.ge.s32.totalorder %s22, 4
      %s32 = sphi 0, %s34
      %s35 = sphi 0, %s32
      %s36 = sphi 0, %s35
      %s52 = sphi 0, %s36
      %s56 = sphi 0, %s56
      %s58 = sphi 0, %s56
      %s59 = sphi 0, %s58
      %s73 = sphi 0, %s59
      %s77 = sphi 0, %s77
      %s79 = sphi 0, %s77
      %s80 = sphi 0, %s79
      %s94 = sphi 0, %s80
      %s98 = sphi 0, %s98
      %s100 = sphi 0, %s98
      %s101 = sphi 0, %s100
      %s115 = sphi 0, %s101
      %s119 = sphi 0, %s119
      %s121 = sphi 0, %s119
      %s122 = sphi 0, %s121
      %s136 = sphi 0, %s122
      %s140 = sphi 0, %s140
      %s142 = sphi 0, %s140
      %s143 = sphi 0, %s142
      %s157 = sphi 0, %s143
      %s161 = sphi 0, %s161
      %s163 = sphi 0, %s161
      %s164 = sphi 0, %s163
      %s178 = sphi 0, %s164
      %s184 = sphi 0, %s186
      %s187 = sphi 0, %s184
      %s188 = sphi 0, %s187
      %s204 = sphi 0, %s188
    $region4: #{tpu_custom_call.1} parent=1 // loop_header_branch
      %25 = sbr.rel (%p23) target = $region8
    $region5: #{tpu_custom_call.1} parent=1 // loop_body
      %s27 = ssub.s32 %s22, 1
      %s28 = ssub.s32 %s22, 2
      %s29 = sadd.s32 %s22, 1
      %s30 = ssub.s32 %s22, %s29
      %p31 = scmp.eq.s32.totalorder %s30, 0
      %s33 = sadd.s32 %s32, 1
      %s34 = scalar_select %p31, %s32, %s33
      %p37 = pneg %p31
      %p38 = scmp.eq.s32.totalorder %s22, 1
      %p39 = por %p37, %p38
      %p40 = scmp.ne.s32.totalorder %s32, %s35
      %p41 = scmp.eq.s32.totalorder %s22, 0
      %p42 = por %p40, %p41
      %p43 = scmp.ne.s32.totalorder %s32, %s35
      %p44 = scmp.eq.s32.totalorder %s27, 1
      %p45 = por %p43, %p44
      %p46 = scmp.ne.s32.totalorder %s35, %s36
      %p47 = scmp.eq.s32.totalorder %s27, 0
      %p48 = por %p46, %p47
      %p49 = scmp.ne.s32.totalorder %s35, %s36
      %p50 = scmp.eq.s32.totalorder %s28, 1
      %p51 = por %p49, %p50
      %p53 = scmp.ne.s32.totalorder %s36, %s52
      %p54 = scmp.eq.s32.totalorder %s28, 0
      %p55 = por %p53, %p54
      %s57 = sadd.s32 %s56, 1
      %p60 = scmp.eq.s32.totalorder %s22, 1
      %p61 = scmp.ne.s32.totalorder %s56, %s58
      %p62 = scmp.eq.s32.totalorder %s22, 0
      %p63 = por %p61, %p62
      %p64 = scmp.ne.s32.totalorder %s56, %s58
      %p65 = scmp.eq.s32.totalorder %s27, 1
      %p66 = por %p64, %p65
      %p67 = scmp.ne.s32.totalorder %s58, %s59
      %p68 = scmp.eq.s32.totalorder %s27, 0
      %p69 = por %p67, %p68
      %p70 = scmp.ne.s32.totalorder %s58, %s59
      %p71 = scmp.eq.s32.totalorder %s28, 1
      %p72 = por %p70, %p71
      %p74 = scmp.ne.s32.totalorder %s59, %s73
      %p75 = scmp.eq.s32.totalorder %s28, 0
      %p76 = por %p74, %p75
      %s78 = sadd.s32 %s77, 1
      %p81 = scmp.eq.s32.totalorder %s22, 1
      %p82 = scmp.ne.s32.totalorder %s77, %s79
      %p83 = scmp.eq.s32.totalorder %s22, 0
      %p84 = por %p82, %p83
      %p85 = scmp.ne.s32.totalorder %s77, %s79
      %p86 = scmp.eq.s32.totalorder %s27, 1
      %p87 = por %p85, %p86
      %p88 = scmp.ne.s32.totalorder %s79, %s80
      %p89 = scmp.eq.s32.totalorder %s27, 0
      %p90 = por %p88, %p89
      %p91 = scmp.ne.s32.totalorder %s79, %s80
      %p92 = scmp.eq.s32.totalorder %s28, 1
      %p93 = por %p91, %p92
      %p95 = scmp.ne.s32.totalorder %s80, %s94
      %p96 = scmp.eq.s32.totalorder %s28, 0
      %p97 = por %p95, %p96
      %s99 = sadd.s32 %s98, 1
      %p102 = scmp.eq.s32.totalorder %s22, 1
      %p103 = scmp.ne.s32.totalorder %s98, %s100
      %p104 = scmp.eq.s32.totalorder %s22, 0
      %p105 = por %p103, %p104
      %p106 = scmp.ne.s32.totalorder %s98, %s100
      %p107 = scmp.eq.s32.totalorder %s27, 1
      %p108 = por %p106, %p107
      %p109 = scmp.ne.s32.totalorder %s100, %s101
      %p110 = scmp.eq.s32.totalorder %s27, 0
      %p111 = por %p109, %p110
      %p112 = scmp.ne.s32.totalorder %s100, %s101
      %p113 = scmp.eq.s32.totalorder %s28, 1
      %p114 = por %p112, %p113
      %p116 = scmp.ne.s32.totalorder %s101, %s115
      %p117 = scmp.eq.s32.totalorder %s28, 0
      %p118 = por %p116, %p117
      %s120 = sadd.s32 %s119, 1
      %p123 = scmp.eq.s32.totalorder %s22, 1
      %p124 = scmp.ne.s32.totalorder %s119, %s121
      %p125 = scmp.eq.s32.totalorder %s22, 0
      %p126 = por %p124, %p125
      %p127 = scmp.ne.s32.totalorder %s119, %s121
      %p128 = scmp.eq.s32.totalorder %s27, 1
      %p129 = por %p127, %p128
      %p130 = scmp.ne.s32.totalorder %s121, %s122
      %p131 = scmp.eq.s32.totalorder %s27, 0
      %p132 = por %p130, %p131
      %p133 = scmp.ne.s32.totalorder %s121, %s122
      %p134 = scmp.eq.s32.totalorder %s28, 1
      %p135 = por %p133, %p134
      %p137 = scmp.ne.s32.totalorder %s122, %s136
      %p138 = scmp.eq.s32.totalorder %s28, 0
      %p139 = por %p137, %p138
      %s141 = sadd.s32 %s140, 1
      %p144 = scmp.eq.s32.totalorder %s22, 1
      %p145 = scmp.ne.s32.totalorder %s140, %s142
      %p146 = scmp.eq.s32.totalorder %s22, 0
      %p147 = por %p145, %p146
      %p148 = scmp.ne.s32.totalorder %s140, %s142
      %p149 = scmp.eq.s32.totalorder %s27, 1
      %p150 = por %p148, %p149
      %p151 = scmp.ne.s32.totalorder %s142, %s143
      %p152 = scmp.eq.s32.totalorder %s27, 0
      %p153 = por %p151, %p152
      %p154 = scmp.ne.s32.totalorder %s142, %s143
      %p155 = scmp.eq.s32.totalorder %s28, 1
      %p156 = por %p154, %p155
      %p158 = scmp.ne.s32.totalorder %s143, %s157
      %p159 = scmp.eq.s32.totalorder %s28, 0
      %p160 = por %p158, %p159
      %s162 = sadd.s32 %s161, 1
      %p165 = scmp.eq.s32.totalorder %s22, 1
      %p166 = scmp.ne.s32.totalorder %s161, %s163
      %p167 = scmp.eq.s32.totalorder %s22, 0
      %p168 = por %p166, %p167
      %p169 = scmp.ne.s32.totalorder %s161, %s163
      %p170 = scmp.eq.s32.totalorder %s27, 1
      %p171 = por %p169, %p170
      %p172 = scmp.ne.s32.totalorder %s163, %s164
      %p173 = scmp.eq.s32.totalorder %s27, 0
      %p174 = por %p172, %p173
      %p175 = scmp.ne.s32.totalorder %s163, %s164
      %p176 = scmp.eq.s32.totalorder %s28, 1
      %p177 = por %p175, %p176
      %p179 = scmp.ne.s32.totalorder %s164, %s178
      %p180 = scmp.eq.s32.totalorder %s28, 0
      %p181 = por %p179, %p180
      %s182 = ssub.s32 %s22, %s29
      %p183 = scmp.eq.s32.totalorder %s182, 0
      %s185 = sadd.s32 %s184, 1
      %s186 = scalar_select %p183, %s184, %s185
      %p189 = pneg %p183
      %p190 = scmp.eq.s32.totalorder %s22, 1
      %p191 = por %p189, %p190
      %p192 = scmp.ne.s32.totalorder %s184, %s187
      %p193 = scmp.eq.s32.totalorder %s22, 0
      %p194 = por %p192, %p193
      %p195 = scmp.ne.s32.totalorder %s184, %s187
      %p196 = scmp.eq.s32.totalorder %s27, 1
      %p197 = por %p195, %p196
      %p198 = scmp.ne.s32.totalorder %s187, %s188
      %p199 = scmp.eq.s32.totalorder %s27, 0
      %p200 = por %p198, %p199
      %p201 = scmp.ne.s32.totalorder %s187, %s188
      %p202 = scmp.eq.s32.totalorder %s28, 1
      %p203 = por %p201, %p202
      %p205 = scmp.ne.s32.totalorder %s188, %s204
      %p206 = scmp.eq.s32.totalorder %s28, 0
      %p207 = por %p205, %p206
      %p208 = scmp.le.s32.totalorder 1, %s22
      %p209 = scmp.lt.s32.totalorder %s22, 3
      %p210 = pnand %p208, %p209
      %p211 = pneg %p210
      // Predicated region
      $region9: #{tpu_custom_call.1} parent=5 // pred_check
        _
      $region10: #{tpu_custom_call.1} parent=5 // pred_check_branch
        %213 = sbr.rel (%p210) target = $region12
      $region11: #{tpu_custom_call.1} parent=5 // pred_region
        %s214 = ssub.s32 %s22, 1
        // Predicated region
        $region13: #{tpu_custom_call.1} parent=11 // pred_check
          %p215 = pneg %p69
        $region14: #{tpu_custom_call.1} parent=11 // pred_check_branch
          %217 = sbr.rel (%p215) target = $region16
        $region15: #{tpu_custom_call.1} parent=11 // pred_region
          %s219 = ssub.s32 256, 256
          %220 = vsyncadd [#allocation6], %s219
          %s221 = sshll.u32 [#allocation5], 4
          %s222 = int_to_ptr.vmem [resolvable:$true] %s221
          %227 = dma.hbm_to_vmem [thread:$0]  %s1, 256, %s222, [#allocation6], 128, 128, 8
        $region16: #{tpu_custom_call.1} parent=11 // pred_fallthru
          _
        // Predicated region
        $region17: #{tpu_custom_call.1} parent=11 // pred_check
          %p228 = pneg %p90
        $region18: #{tpu_custom_call.1} parent=11 // pred_check_branch
          %230 = sbr.rel (%p228) target = $region20
        $region19: #{tpu_custom_call.1} parent=11 // pred_region
          %s232 = ssub.s32 16, 16
          %233 = vsyncadd [#allocation6], %s232
          %s235 = sshll.u32 [#allocation7], 4
          %s236 = int_to_ptr.vmem [resolvable:$true] %s235
          %238 = dma.hbm_to_vmem [thread:$0]  %s2, 16, %s236, [#allocation6]
        $region20: #{tpu_custom_call.1} parent=11 // pred_fallthru
          _
        // Predicated region
        $region21: #{tpu_custom_call.1} parent=11 // pred_check
          %p239 = pneg %p111
        $region22: #{tpu_custom_call.1} parent=11 // pred_check_branch
          %241 = sbr.rel (%p239) target = $region24
        $region23: #{tpu_custom_call.1} parent=11 // pred_region
          %s243 = ssub.s32 512, 512
          %244 = vsyncadd [#allocation9], %s243
          %s245 = sshll.u32 [#allocation8], 4
          %s246 = int_to_ptr.vmem [resolvable:$true] %s245
          %251 = dma.hbm_to_vmem [thread:$0]  %s3, 512, %s246, [#allocation9], 128, 128, 8
        $region24: #{tpu_custom_call.1} parent=11 // pred_fallthru
          _
        // Predicated region
        $region25: #{tpu_custom_call.1} parent=11 // pred_check
          %p252 = pneg %p132
        $region26: #{tpu_custom_call.1} parent=11 // pred_check_branch
          %254 = sbr.rel (%p252) target = $region28
        $region27: #{tpu_custom_call.1} parent=11 // pred_region
          %s256 = ssub.s32 16, 16
          %257 = vsyncadd [#allocation9], %s256
          %s259 = sshll.u32 [#allocation10], 4
          %s260 = int_to_ptr.vmem [resolvable:$true] %s259
          %262 = dma.hbm_to_vmem [thread:$0]  %s4, 16, %s260, [#allocation9]
        $region28: #{tpu_custom_call.1} parent=11 // pred_fallthru
          _
        // Predicated region
        $region29: #{tpu_custom_call.1} parent=11 // pred_check
          %p263 = pneg %p153
        $region30: #{tpu_custom_call.1} parent=11 // pred_check_branch
          %265 = sbr.rel (%p263) target = $region32
        $region31: #{tpu_custom_call.1} parent=11 // pred_region
          %s267 = ssub.s32 512, 512
          %268 = vsyncadd [#allocation12], %s267
          %s269 = sshll.u32 [#allocation11], 4
          %s270 = int_to_ptr.vmem [resolvable:$true] %s269
          %275 = dma.hbm_to_vmem [thread:$0]  %s5, 512, %s270, [#allocation12], 128, 128, 8
        $region32: #{tpu_custom_call.1} parent=11 // pred_fallthru
          _
        // Predicated region
        $region33: #{tpu_custom_call.1} parent=11 // pred_check
          %p276 = pneg %p174
        $region34: #{tpu_custom_call.1} parent=11 // pred_check_branch
          %278 = sbr.rel (%p276) target = $region36
        $region35: #{tpu_custom_call.1} parent=11 // pred_region
          %s280 = ssub.s32 16, 16
          %281 = vsyncadd [#allocation12], %s280
          %s283 = sshll.u32 [#allocation13], 4
          %s284 = int_to_ptr.vmem [resolvable:$true] %s283
          %286 = dma.hbm_to_vmem [thread:$0]  %s6, 16, %s284, [#allocation12]
        $region36: #{tpu_custom_call.1} parent=11 // pred_fallthru
          _
      $region12: #{tpu_custom_call.1} parent=5 // pred_fallthru
        _
      %p287 = scmp.lt.s32.totalorder %s22, 2
      // Predicated region
      $region37: #{tpu_custom_call.1} parent=5 // pred_check
        %p288 = pneg %p287
      $region38: #{tpu_custom_call.1} parent=5 // pred_check_branch
        %290 = sbr.rel (%p288) target = $region40
      $region39: #{tpu_custom_call.1} parent=5 // pred_region
        // Predicated region
        $region41: #{tpu_custom_call.1} parent=39 // pred_check
          %p291 = pneg %p42
        $region42: #{tpu_custom_call.1} parent=39 // pred_check_branch
          %293 = sbr.rel (%p291) target = $region44
        $region43: #{tpu_custom_call.1} parent=39 // pred_region
          %s294 = sand.u32 %s32, 1
          %s295 = scalar_lea.sflag [#allocation3], %s294
          %s296 = sand.u32 %s32, 1
          %s297 = smul.addr %s296, 8
          %s298 = scalar_lea.vmem [#allocation2], %s297
          %s300 = ssub.s32 128, 128
          %301 = vsyncadd %s295, %s300
          %s302 = smul.addr %s22, 128
          %s303 = scalar_lea.hbm %s0, %s302
          %s305 = sshll.u32 %s298, 4
          %s306 = int_to_ptr.vmem [resolvable:$true] %s305
          %308 = dma.hbm_to_vmem [thread:$0]  %s303, 128, %s306, %s295
        $region44: #{tpu_custom_call.1} parent=39 // pred_fallthru
          _
      $region40: #{tpu_custom_call.1} parent=5 // pred_fallthru
        _
      %p309 = scmp.le.s32.totalorder 1, %s22
      %p310 = scmp.lt.s32.totalorder %s22, 3
      %p311 = pnand %p309, %p310
      %p312 = pneg %p311
      // Predicated region
      $region45: #{tpu_custom_call.1} parent=5 // pred_check
        _
      $region46: #{tpu_custom_call.1} parent=5 // pred_check_branch
        %314 = sbr.rel (%p311) target = $region48
      $region47: #{tpu_custom_call.1} parent=5 // pred_region
        %s315 = ssub.s32 %s22, 1
        %s316 = sand.u32 %s35, 1
        %s317 = scalar_lea.sflag [#allocation3], %s316
        %s318 = sand.u32 %s35, 1
        %s319 = smul.addr %s318, 8
        %s320 = scalar_lea.vmem [#allocation2], %s319
        // Predicated region
        $region49: #{tpu_custom_call.1} parent=47 // pred_check
          %p321 = pneg %p48
        $region50: #{tpu_custom_call.1} parent=47 // pred_check_branch
          %323 = sbr.rel (%p321) target = $region52
        $region51: #{tpu_custom_call.1} parent=47 // pred_region
          %324 = dma.done %s317, 128
        $region52: #{tpu_custom_call.1} parent=47 // pred_fallthru
          _
        // Predicated region
        $region53: #{tpu_custom_call.1} parent=47 // pred_check
          %p325 = pneg %p69
        $region54: #{tpu_custom_call.1} parent=47 // pred_check_branch
          %327 = sbr.rel (%p325) target = $region56
        $region55: #{tpu_custom_call.1} parent=47 // pred_region
          %328 = dma.done [#allocation6], 256
        $region56: #{tpu_custom_call.1} parent=47 // pred_fallthru
          _
        // Predicated region
        $region57: #{tpu_custom_call.1} parent=47 // pred_check
          %p329 = pneg %p90
        $region58: #{tpu_custom_call.1} parent=47 // pred_check_branch
          %331 = sbr.rel (%p329) target = $region60
        $region59: #{tpu_custom_call.1} parent=47 // pred_region
          %332 = dma.done [#allocation6], 16
        $region60: #{tpu_custom_call.1} parent=47 // pred_fallthru
          _
        // Predicated region
        $region61: #{tpu_custom_call.1} parent=47 // pred_check
          %p333 = pneg %p111
        $region62: #{tpu_custom_call.1} parent=47 // pred_check_branch
          %335 = sbr.rel (%p333) target = $region64
        $region63: #{tpu_custom_call.1} parent=47 // pred_region
          %336 = dma.done [#allocation9], 512
        $region64: #{tpu_custom_call.1} parent=47 // pred_fallthru
          _
        // Predicated region
        $region65: #{tpu_custom_call.1} parent=47 // pred_check
          %p337 = pneg %p132
        $region66: #{tpu_custom_call.1} parent=47 // pred_check_branch
          %339 = sbr.rel (%p337) target = $region68
        $region67: #{tpu_custom_call.1} parent=47 // pred_region
          %340 = dma.done [#allocation9], 16
        $region68: #{tpu_custom_call.1} parent=47 // pred_fallthru
          _
        // Predicated region
        $region69: #{tpu_custom_call.1} parent=47 // pred_check
          %p341 = pneg %p153
        $region70: #{tpu_custom_call.1} parent=47 // pred_check_branch
          %343 = sbr.rel (%p341) target = $region72
        $region71: #{tpu_custom_call.1} parent=47 // pred_region
          %344 = dma.done [#allocation12], 512
        $region72: #{tpu_custom_call.1} parent=47 // pred_fallthru
          _
        // Predicated region
        $region73: #{tpu_custom_call.1} parent=47 // pred_check
          %p345 = pneg %p174
        $region74: #{tpu_custom_call.1} parent=47 // pred_check_branch
          %347 = sbr.rel (%p345) target = $region76
        $region75: #{tpu_custom_call.1} parent=47 // pred_region
          %348 = dma.done [#allocation12], 16
        $region76: #{tpu_custom_call.1} parent=47 // pred_fallthru
          _
        %s349 = sand.u32 %s35, 1
        %s350 = scalar_lea.sflag [#allocation3], %s349
        %s351 = sand.u32 %s35, 1
        %s352 = smul.addr %s351, 8
        %s353 = scalar_lea.vmem [#allocation2], %s352
        %p354 = pneg %p48
        %p355 = pneg %p45
        %p356 = pneg %p69
        %p357 = pneg %p66
        %p358 = pneg %p90
        %p359 = pneg %p87
        %p360 = pneg %p111
        %p361 = pneg %p108
        %p362 = pneg %p132
        %p363 = pneg %p129
        %p364 = pneg %p153
        %p365 = pneg %p150
        %p366 = pneg %p174
        %p367 = pneg %p171
        %p368 = pneg %p200
        %p369 = pneg %p197
        %s370 = sand.u32 %s187, 1
        %s371 = scalar_lea.sflag [#allocation4], %s370
        %s372 = sand.u32 %s187, 1
        %s373 = smul.addr %s372, 8
        %s374 = scalar_lea.vmem [#allocation14], %s373
        %v375 = vld [vmem:[%s320] sm:$0xff]
        %v376 = vld [vmem:[#allocation5] sm:$0xff]
        %v377 = vld [vmem:[#allocation5 + $0x8] sm:$0xff]
        %v378 = vld [vmem:[#allocation7] sm:$0x1]
        %v380 = vlaneseq
        %v381 = vshrl.u32 %v380, 7
        %v382 = vsub.s32 0, %v381
        %v383 = vrot.slane %v378, %v382
        %vm385 = vcmask 130048
        %v387 = vsel %vm385, %v375, 0
        %389 = vmatprep.subr.mxu0 0.0
        %390 = vmatpush1.msra.mxu0 %v376
        %391 = vmatprep.subr.mxu0 0.0
        %392 = vmatpush1.msra.mxu0 %v377
        %393 = vmatprep.subr.mxu0 0.0
        %394 = vmatpush1.msra.mxu0 0.0
        %395 = vmatprep.subr.mxu0 0.0
        %396 = vmatpush1.msra.mxu0 0.0
        %397 = vmatprep.subr.mxu0 0.0
        %398 = vmatpush1.msra.mxu0 0.0
        %399 = vmatprep.subr.mxu0 0.0
        %400 = vmatpush1.msra.mxu0 0.0
        %401 = vmatprep.subr.mxu0 0.0
        %402 = vmatpush1.msra.mxu0 0.0
        %403 = vmatprep.subr.mxu0 0.0
        %404 = vmatpush1.msra.mxu0 0.0
        %405 = vmatprep.subr.mxu0 0.0
        %406 = vmatpush1.msra.mxu0 0.0
        %407 = vmatprep.subr.mxu0 0.0
        %408 = vmatpush1.msra.mxu0 0.0
        %409 = vmatprep.subr.mxu0 0.0
        %410 = vmatpush1.msra.mxu0 0.0
        %411 = vmatprep.subr.mxu0 0.0
        %412 = vmatpush1.msra.mxu0 0.0
        %413 = vmatprep.subr.mxu0 0.0
        %414 = vmatpush1.msra.mxu0 0.0
        %415 = vmatprep.subr.mxu0 0.0
        %416 = vmatpush1.msra.mxu0 0.0
        %417 = vmatprep.subr.mxu0 0.0
        %418 = vmatpush1.msra.mxu0 0.0
        %419 = vmatprep.subr.mxu0 0.0
        %420 = vmatpush1.msra.mxu0 0.0
        %421 = vmatprep.subr.mxu0 0.0
        %422 = vmatpush1.msra.mxu0 0.0
        %423 = vmatprep.subr.mxu0 0.0
        %424 = vmatpush1.msra.mxu0 0.0
        %425 = vmatprep.subr.mxu0 0.0
        %426 = vmatpush1.msra.mxu0 0.0
        %427 = vmatprep.subr.mxu0 0.0
        %428 = vmatpush1.msra.mxu0 0.0
        %429 = vmatprep.subr.mxu0 0.0
        %430 = vmatpush1.msra.mxu0 0.0
        %431 = vmatprep.subr.mxu0 0.0
        %432 = vmatpush1.msra.mxu0 0.0
        %433 = vmatprep.subr.mxu0 0.0
        %434 = vmatpush1.msra.mxu0 0.0
        %435 = vmatprep.subr.mxu0 0.0
        %436 = vmatpush1.msra.mxu0 0.0
        %437 = vmatprep.subr.mxu0 0.0
        %438 = vmatpush1.msra.mxu0 0.0
        %439 = vmatprep.subr.mxu0 0.0
        %440 = vmatpush1.msra.mxu0 0.0
        %441 = vmatprep.subr.mxu0 0.0
        %442 = vmatpush1.msra.mxu0 0.0
        %443 = vmatprep.subr.mxu0 0.0
        %444 = vmatpush1.msra.mxu0 0.0
        %445 = vmatprep.subr.mxu0 0.0
        %446 = vmatpush1.msra.mxu0 0.0
        %447 = vmatprep.subr.mxu0 0.0
        %448 = vmatpush1.msra.mxu0 0.0
        %449 = vmatprep.subr.mxu0 0.0
        %450 = vmatpush1.msra.mxu0 0.0
        %451 = vmatprep.subr.mxu0 0.0
        %452 = vmatpush1.msra.mxu0 0.0
        %453 = vmatprep.mubr.f32.mxu0 0.0
        %454 = vmatmul.mubr.f32.gmra.mrb[0].mxu0 %v387
        %v455 = vpop.f32.mrb[0].mxu0
        %v456 = vadd.f32 %v383, %v455
        %v457 = vpop.f32.mrb[0].mxu0
        %458 = vdwg.mxu0
        %v459 = vmax.f32 %v456, 0.0
        %v460 = vld [vmem:[#allocation8] sm:$0xff]
        %v461 = vld [vmem:[#allocation8 + $0x8] sm:$0xff]
        %v462 = vld [vmem:[#allocation8 + $0x10] sm:$0xff]
        %v463 = vld [vmem:[#allocation8 + $0x18] sm:$0xff]
        %v464 = vld [vmem:[#allocation10] sm:$0x1]
        %v466 = vlaneseq
        %v467 = vshrl.u32 %v466, 7
        %v468 = vsub.s32 0, %v467
        %v469 = vrot.slane %v464, %v468
        %vm471 = vcmask 261120
        %v473 = vsel %vm471, %v459, 0
        %475 = vmatprep.subr.mxu0 0.0
        %476 = vmatpush1.msra.mxu0 %v460
        %477 = vmatprep.subr.mxu0 0.0
        %478 = vmatpush1.msra.mxu0 %v461
        %479 = vmatprep.subr.mxu0 0.0
        %480 = vmatpush1.msra.mxu0 %v462
        %481 = vmatprep.subr.mxu0 0.0
        %482 = vmatpush1.msra.mxu0 %v463
        %483 = vmatprep.subr.mxu0 0.0
        %484 = vmatpush1.msra.mxu0 0.0
        %485 = vmatprep.subr.mxu0 0.0
        %486 = vmatpush1.msra.mxu0 0.0
        %487 = vmatprep.subr.mxu0 0.0
        %488 = vmatpush1.msra.mxu0 0.0
        %489 = vmatprep.subr.mxu0 0.0
        %490 = vmatpush1.msra.mxu0 0.0
        %491 = vmatprep.subr.mxu0 0.0
        %492 = vmatpush1.msra.mxu0 0.0
        %493 = vmatprep.subr.mxu0 0.0
        %494 = vmatpush1.msra.mxu0 0.0
        %495 = vmatprep.subr.mxu0 0.0
        %496 = vmatpush1.msra.mxu0 0.0
        %497 = vmatprep.subr.mxu0 0.0
        %498 = vmatpush1.msra.mxu0 0.0
        %499 = vmatprep.subr.mxu0 0.0
        %500 = vmatpush1.msra.mxu0 0.0
        %501 = vmatprep.subr.mxu0 0.0
        %502 = vmatpush1.msra.mxu0 0.0
        %503 = vmatprep.subr.mxu0 0.0
        %504 = vmatpush1.msra.mxu0 0.0
        %505 = vmatprep.subr.mxu0 0.0
        %506 = vmatpush1.msra.mxu0 0.0
        %507 = vmatprep.subr.mxu0 0.0
        %508 = vmatpush1.msra.mxu0 0.0
        %509 = vmatprep.subr.mxu0 0.0
        %510 = vmatpush1.msra.mxu0 0.0
        %511 = vmatprep.subr.mxu0 0.0
        %512 = vmatpush1.msra.mxu0 0.0
        %513 = vmatprep.subr.mxu0 0.0
        %514 = vmatpush1.msra.mxu0 0.0
        %515 = vmatprep.subr.mxu0 0.0
        %516 = vmatpush1.msra.mxu0 0.0
        %517 = vmatprep.subr.mxu0 0.0
        %518 = vmatpush1.msra.mxu0 0.0
        %519 = vmatprep.subr.mxu0 0.0
        %520 = vmatpush1.msra.mxu0 0.0
        %521 = vmatprep.subr.mxu0 0.0
        %522 = vmatpush1.msra.mxu0 0.0
        %523 = vmatprep.subr.mxu0 0.0
        %524 = vmatpush1.msra.mxu0 0.0
        %525 = vmatprep.subr.mxu0 0.0
        %526 = vmatpush1.msra.mxu0 0.0
        %527 = vmatprep.subr.mxu0 0.0
        %528 = vmatpush1.msra.mxu0 0.0
        %529 = vmatprep.subr.mxu0 0.0
        %530 = vmatpush1.msra.mxu0 0.0
        %531 = vmatprep.subr.mxu0 0.0
        %532 = vmatpush1.msra.mxu0 0.0
        %533 = vmatprep.subr.mxu0 0.0
        %534 = vmatpush1.msra.mxu0 0.0
        %535 = vmatprep.subr.mxu0 0.0
        %536 = vmatpush1.msra.mxu0 0.0
        %537 = vmatprep.subr.mxu0 0.0
        %538 = vmatpush1.msra.mxu0 0.0
        %539 = vmatprep.mubr.f32.mxu0 0.0
        %540 = vmatmul.mubr.f32.gmra.mrb[0].mxu0 %v473
        %v541 = vpop.f32.mrb[0].mxu0
        %v542 = vadd.f32 %v469, %v541
        %v543 = vpop.f32.mrb[0].mxu0
        %544 = vdwg.mxu0
        %v545 = vmax.f32 %v542, 0.0
        %v546 = vld [vmem:[#allocation11] sm:$0xff]
        %v547 = vld [vmem:[#allocation11 + $0x8] sm:$0xff]
        %v548 = vld [vmem:[#allocation11 + $0x10] sm:$0xff]
        %v549 = vld [vmem:[#allocation11 + $0x18] sm:$0xff]
        %v550 = vld [vmem:[#allocation13] sm:$0x1]
        %v552 = vlaneseq
        %v553 = vshrl.u32 %v552, 7
        %v554 = vsub.s32 0, %v553
        %v555 = vrot.slane %v550, %v554
        %v558 = vsel %vm471, %v545, 0
        %560 = vmatprep.subr.mxu0 0.0
        %561 = vmatpush1.msra.mxu0 %v546
        %562 = vmatprep.subr.mxu0 0.0
        %563 = vmatpush1.msra.mxu0 %v547
        %564 = vmatprep.subr.mxu0 0.0
        %565 = vmatpush1.msra.mxu0 %v548
        %566 = vmatprep.subr.mxu0 0.0
        %567 = vmatpush1.msra.mxu0 %v549
        %568 = vmatprep.subr.mxu0 0.0
        %569 = vmatpush1.msra.mxu0 0.0
        %570 = vmatprep.subr.mxu0 0.0
        %571 = vmatpush1.msra.mxu0 0.0
        %572 = vmatprep.subr.mxu0 0.0
        %573 = vmatpush1.msra.mxu0 0.0
        %574 = vmatprep.subr.mxu0 0.0
        %575 = vmatpush1.msra.mxu0 0.0
        %576 = vmatprep.subr.mxu0 0.0
        %577 = vmatpush1.msra.mxu0 0.0
        %578 = vmatprep.subr.mxu0 0.0
        %579 = vmatpush1.msra.mxu0 0.0
        %580 = vmatprep.subr.mxu0 0.0
        %581 = vmatpush1.msra.mxu0 0.0
        %582 = vmatprep.subr.mxu0 0.0
        %583 = vmatpush1.msra.mxu0 0.0
        %584 = vmatprep.subr.mxu0 0.0
        %585 = vmatpush1.msra.mxu0 0.0
        %586 = vmatprep.subr.mxu0 0.0
        %587 = vmatpush1.msra.mxu0 0.0
        %588 = vmatprep.subr.mxu0 0.0
        %589 = vmatpush1.msra.mxu0 0.0
        %590 = vmatprep.subr.mxu0 0.0
        %591 = vmatpush1.msra.mxu0 0.0
        %592 = vmatprep.subr.mxu0 0.0
        %593 = vmatpush1.msra.mxu0 0.0
        %594 = vmatprep.subr.mxu0 0.0
        %595 = vmatpush1.msra.mxu0 0.0
        %596 = vmatprep.subr.mxu0 0.0
        %597 = vmatpush1.msra.mxu0 0.0
        %598 = vmatprep.subr.mxu0 0.0
        %599 = vmatpush1.msra.mxu0 0.0
        %600 = vmatprep.subr.mxu0 0.0
        %601 = vmatpush1.msra.mxu0 0.0
        %602 = vmatprep.subr.mxu0 0.0
        %603 = vmatpush1.msra.mxu0 0.0
        %604 = vmatprep.subr.mxu0 0.0
        %605 = vmatpush1.msra.mxu0 0.0
        %606 = vmatprep.subr.mxu0 0.0
        %607 = vmatpush1.msra.mxu0 0.0
        %608 = vmatprep.subr.mxu0 0.0
        %609 = vmatpush1.msra.mxu0 0.0
        %610 = vmatprep.subr.mxu0 0.0
        %611 = vmatpush1.msra.mxu0 0.0
        %612 = vmatprep.subr.mxu0 0.0
        %613 = vmatpush1.msra.mxu0 0.0
        %614 = vmatprep.subr.mxu0 0.0
        %615 = vmatpush1.msra.mxu0 0.0
        %616 = vmatprep.subr.mxu0 0.0
        %617 = vmatpush1.msra.mxu0 0.0
        %618 = vmatprep.subr.mxu0 0.0
        %619 = vmatpush1.msra.mxu0 0.0
        %620 = vmatprep.subr.mxu0 0.0
        %621 = vmatpush1.msra.mxu0 0.0
        %622 = vmatprep.subr.mxu0 0.0
        %623 = vmatpush1.msra.mxu0 0.0
        %624 = vmatprep.mubr.f32.mxu0 0.0
        %625 = vmatmul.mubr.f32.gmra.mrb[0].mxu0 %v558
        %v626 = vpop.f32.mrb[0].mxu0
        %v627 = vadd.f32 %v555, %v626
        %v628 = vpop.f32.mrb[0].mxu0
        %629 = vdwg.mxu0
        %630 = vst.msk [vmem:[%s374] sm:$0xff] %vm385, %v627
        %s631 = sand.u32 %s187, 1
        %s632 = scalar_lea.sflag [#allocation4], %s631
        %s633 = sand.u32 %s187, 1
        %s634 = smul.addr %s633, 8
        %s635 = scalar_lea.vmem [#allocation14], %s634
        // Predicated region
        $region77: #{tpu_custom_call.1} parent=47 // pred_check
          %p636 = pneg %p197
        $region78: #{tpu_custom_call.1} parent=47 // pred_check_branch
          %638 = sbr.rel (%p636) target = $region80
        $region79: #{tpu_custom_call.1} parent=47 // pred_region
          %s640 = ssub.s32 128, 128
          %641 = vsyncadd %s632, %s640
          %s642 = smul.addr %s27, 128
          %s643 = scalar_lea.hbm %s7, %s642
          %s645 = sshll.u32 %s635, 4
          %s646 = int_to_ptr.vmem [resolvable:$true] %s645
          %648 = dma.vmem_to_hbm [thread:$0]  %s646, 128, %s643, %s632
        $region80: #{tpu_custom_call.1} parent=47 // pred_fallthru
          _
      $region48: #{tpu_custom_call.1} parent=5 // pred_fallthru
        _
      %p649 = scmp.le.s32.totalorder 2, %s22
      // Predicated region
      $region81: #{tpu_custom_call.1} parent=5 // pred_check
        %p650 = pneg %p649
      $region82: #{tpu_custom_call.1} parent=5 // pred_check_branch
        %652 = sbr.rel (%p650) target = $region84
      $region83: #{tpu_custom_call.1} parent=5 // pred_region
        %s653 = ssub.s32 %s22, 2
        // Predicated region
        $region85: #{tpu_custom_call.1} parent=83 // pred_check
          %p654 = pneg %p203
        $region86: #{tpu_custom_call.1} parent=83 // pred_check_branch
          %656 = sbr.rel (%p654) target = $region88
        $region87: #{tpu_custom_call.1} parent=83 // pred_region
          %s657 = sand.u32 %s188, 1
          %s658 = scalar_lea.sflag [#allocation4], %s657
          %s659 = sand.u32 %s188, 1
          %s660 = smul.addr %s659, 8
          %s661 = scalar_lea.vmem [#allocation14], %s660
          %662 = dma.done %s658, 128
        $region88: #{tpu_custom_call.1} parent=83 // pred_fallthru
          _
      $region84: #{tpu_custom_call.1} parent=5 // pred_fallthru
        _
    $region6: #{tpu_custom_call.1} parent=1 // loop_footer
      %s26 = sadd.s32 1, %s22
    $region7: #{tpu_custom_call.1} parent=1 // loop_footer_branch
      %21 = sbr.rel target = $region3
    $region8: #{tpu_custom_call.1} parent=1 // loop_exit
      _
    %663 = vsyncpa [#allocation3], 1
    %s664 = scalar_lea.sflag [#allocation3], 1
    %665 = vsyncpa %s664, 1
    %666 = vsyncpa [#allocation6], 1
    %667 = vsyncpa [#allocation9], 1
    %668 = vsyncpa [#allocation12], 1
    %669 = vsyncpa [#allocation4], 1
    %s670 = scalar_lea.sflag [#allocation4], 1
    %671 = vsyncpa %s670, 1

</llo_original>
